<compile_context>
chip_gen: v6e
topology: v6e:2x2x1
jax: 0.10.0
libtpu: 0.0.40
codegen_flags: <defaults>
</compile_context>

<pallas_src>
import jax
import jax.numpy as jnp
from jax.experimental import pallas as pl
from jax.experimental.pallas import tpu as pltpu

# --- model hyper-parameters (GenBlast.__init__ defaults) ---------------------
INPUT_SIZE = 24
HIDDEN = 50
LAYERS = 3
MID = 30          # linear1 output
OUT = 2           # linear2 output

# --- packed layout constants -------------------------------------------------
FPAD = 128                      # padded feature width (x / h / z rows)
NGATES = 3                      # gates i, g, o (forget gate dropped: c_prev == 0)
LAYER_W = NGATES * FPAD         # 384 lanes per LSTM-layer weight block
W1_OFF = LAYERS * LAYER_W       # 1152 : linear1 block offset
W2_OFF = W1_OFF + FPAD          # 1280 : linear2 block offset
TOTAL_W = W2_OFF + FPAD         # 1408 : total packed lane width
BIAS_LANE = FPAD - 1            # lane 127 carries the constant 1.0 (bias folding)


# --- Pallas kernel -----------------------------------------------------------
def genblast_kernel(x_ref,      # (1, FPAD)        padded input row, lane 127 == 1
                    w_ref,      # (FPAD, TOTAL_W)  packed weights (+ folded biases)
                    out_ref):   # (1, OUT)
    # Constant one-hot at the bias lane; re-arms the "1" used for bias folding.
    one_hot = (jax.lax.broadcasted_iota(jnp.int32, (1, FPAD), 1)
               == BIAS_LANE).astype(jnp.float32)

    h = x_ref[...]                                          # (1, FPAD)
    for l in range(LAYERS):
        # One fused MXU matmul per layer: produces [i | g | o] pre-activations,
        # each in its own 128-lane block (bias already included via lane 127).
        pre = jnp.dot(h, w_ref[:, l * LAYER_W:(l + 1) * LAYER_W],
                      preferred_element_type=jnp.float32)   # (1, 3*FPAD)
        i_g = jax.nn.sigmoid(pre[:, 0:FPAD])
        g_g = jnp.tanh(pre[:, FPAD:2 * FPAD])
        o_g = jax.nn.sigmoid(pre[:, 2 * FPAD:3 * FPAD])
        # c_prev == 0  =>  c = i*g ; forget gate dropped.  Padded lanes stay 0
        # (sigmoid(0)*tanh(0) == 0); add one_hot so lane 127 is 1 for the next
        # bias-folded matmul.
        h = o_g * jnp.tanh(i_g * g_g) + one_hot             # (1, FPAD)

    # Dropout(p=0.01) is identity at inference.
    # linear1 (b1 folded into row 127 of its weight block)
    z = jnp.dot(h, w_ref[:, W1_OFF:W1_OFF + FPAD],
                preferred_element_type=jnp.float32) + one_hot   # (1, FPAD)
    # linear2 (b2 folded into row 127 of its weight block)
    out_full = jnp.dot(z, w_ref[:, W2_OFF:W2_OFF + FPAD],
                       preferred_element_type=jnp.float32)      # (1, FPAD)
    out_ref[...] = out_full[:, :OUT]


# --- offline weight packing (run ONCE, outside the per-call hot path) --------
def pack_params(w_ih, w_hh, b_ih, b_hh, w1, b1, w2, b2):
    """Packs all weights/biases into one (FPAD, TOTAL_W) f32 slab.

    Per LSTM layer, gates i/g/o of W_ih^T go into three 128-lane blocks with
    the combined bias (b_ih + b_hh) in row BIAS_LANE.  W_hh is dropped: with a
    single timestep and zero-initialized hidden state it contributes nothing.
    """
    del w_hh  # exact: h_prev == 0 for the single timestep
    blocks = []
    for l in range(LAYERS):
        Wt = jnp.asarray(w_ih[l], jnp.float32).T                  # (in_l, 4H)
        b = jnp.asarray(b_ih[l], jnp.float32) + jnp.asarray(b_hh[l], jnp.float32)
        in_l = Wt.shape[0]
        for g in (0, 2, 3):                                       # i, g, o
            blk = jnp.zeros((FPAD, FPAD), jnp.float32)
            blk = blk.at[:in_l, :HIDDEN].set(Wt[:, g * HIDDEN:(g + 1) * HIDDEN])
            blk = blk.at[BIAS_LANE, :HIDDEN].set(b[g * HIDDEN:(g + 1) * HIDDEN])
            blocks.append(blk)
    w1_blk = jnp.zeros((FPAD, FPAD), jnp.float32)
    w1_blk = w1_blk.at[:HIDDEN, :MID].set(jnp.asarray(w1, jnp.float32).T)
    w1_blk = w1_blk.at[BIAS_LANE, :MID].set(jnp.asarray(b1, jnp.float32))
    blocks.append(w1_blk)
    w2_blk = jnp.zeros((FPAD, FPAD), jnp.float32)
    w2_blk = w2_blk.at[:MID, :OUT].set(jnp.asarray(w2, jnp.float32).T)
    w2_blk = w2_blk.at[BIAS_LANE, :OUT].set(jnp.asarray(b2, jnp.float32))
    blocks.append(w2_blk)
    return jnp.concatenate(blocks, axis=1)                        # (128, 1408)


# --- wrapper (hot path: pad input + one pallas_call, 2 operands total) -------
@jax.jit
def genblast_forward(input_seq, packed_w):
    """input_seq: (INPUT_SIZE,) f32; packed_w: output of pack_params.
    Returns (1, OUT) f32."""
    x = jnp.zeros((1, FPAD), jnp.float32)
    x = x.at[0, :INPUT_SIZE].set(input_seq.astype(jnp.float32))
    x = x.at[0, BIAS_LANE].set(1.0)                               # bias lane

    vmem = pl.BlockSpec(memory_space=pltpu.MemorySpace.VMEM)
    return pl.pallas_call(
        genblast_kernel,
        out_shape=jax.ShapeDtypeStruct((1, OUT), jnp.float32),
        in_specs=[vmem, vmem],
        out_specs=vmem,
    )(x, packed_w)


# --- pure-JAX reference (mirrors the PyTorch forward) ------------------------
def genblast_reference(input_seq, w_ih, w_hh, b_ih, b_hh, w1, b1, w2, b2):
    x = input_seq.reshape(-1, 1, input_seq.shape[0])        # (1, 1, 24)
    inp = x[0]                                              # (1, 24)
    for l in range(LAYERS):
        h = jnp.zeros((1, HIDDEN), jnp.float32)
        c = jnp.zeros((1, HIDDEN), jnp.float32)
        gates = inp @ w_ih[l].T + h @ w_hh[l].T + b_ih[l] + b_hh[l]
        i = jax.nn.sigmoid(gates[:, :HIDDEN])
        f = jax.nn.sigmoid(gates[:, HIDDEN:2 * HIDDEN])
        g = jnp.tanh(gates[:, 2 * HIDDEN:3 * HIDDEN])
        o = jax.nn.sigmoid(gates[:, 3 * HIDDEN:])
        c = f * c + i * g
        inp = o * jnp.tanh(c)
    z = inp @ w1.T + b1
    return z @ w2.T + b2


# --- deterministic parameter init (PyTorch-style uniform ranges) -------------
def init_params(key):
    keys = jax.random.split(key, 4 * LAYERS + 4)
    k_lstm = 1.0 / jnp.sqrt(jnp.float32(HIDDEN))
    w_ih, w_hh, b_ih, b_hh = [], [], [], []
    idx = 0
    for l in range(LAYERS):
        in_l = INPUT_SIZE if l == 0 else HIDDEN
        w_ih.append(jax.random.uniform(keys[idx], (4 * HIDDEN, in_l),
                                       jnp.float32, -k_lstm, k_lstm)); idx += 1
        w_hh.append(jax.random.uniform(keys[idx], (4 * HIDDEN, HIDDEN),
                                       jnp.float32, -k_lstm, k_lstm)); idx += 1
        b_ih.append(jax.random.uniform(keys[idx], (4 * HIDDEN,),
                                       jnp.float32, -k_lstm, k_lstm)); idx += 1
        b_hh.append(jax.random.uniform(keys[idx], (4 * HIDDEN,),
                                       jnp.float32, -k_lstm, k_lstm)); idx += 1
    k1 = 1.0 / jnp.sqrt(jnp.float32(HIDDEN))
    k2 = 1.0 / jnp.sqrt(jnp.float32(MID))
    w1 = jax.random.uniform(keys[idx], (MID, HIDDEN), jnp.float32, -k1, k1); idx += 1
    b1 = jax.random.uniform(keys[idx], (MID,), jnp.float32, -k1, k1); idx += 1
    w2 = jax.random.uniform(keys[idx], (OUT, MID), jnp.float32, -k2, k2); idx += 1
    b2 = jax.random.uniform(keys[idx], (OUT,), jnp.float32, -k2, k2); idx += 1
    return w_ih, w_hh, b_ih, b_hh, w1, b1, w2, b2


if __name__ == "__main__":
    key = jax.random.PRNGKey(0)
    k_params, k_x = jax.random.split(key)
    params = init_params(k_params)
    input_seq = jax.random.normal(k_x, (INPUT_SIZE,), jnp.float32)

    # One-time packing (outside the per-call hot path).
    packed_w = jax.block_until_ready(pack_params(*params))

    out = genblast_forward(input_seq, packed_w)
    out = jax.block_until_ready(out)

    ref = genblast_reference(input_seq, *params)
    assert out.shape == (1, OUT) and out.dtype == jnp.float32
    assert jnp.allclose(out, ref, atol=1e-5, rtol=1e-5), (out, ref)
    print("KERNEL_OK")
</pallas_src>

<mosaic_0001>
module attributes {stable_mosaic.version = 11 : i64} {
  func.func @genblast_kernel(%arg0: memref<1x128xf32, #tpu.memory_space<vmem>>, %arg1: memref<128x1408xf32, #tpu.memory_space<vmem>>, %arg2: memref<1x2xf32, #tpu.memory_space<vmem>>) attributes {dimension_semantics = [], scalar_prefetch = 0 : i64, scratch_operands = 0 : i64, tpu.core_type = #tpu.core_type<tc>} {
    %0 = tpu.iota {dimensions = array<i32: 1>} : vector<1x128xi32>
    %c127_i32 = arith.constant 127 : i32
    %1 = vector.broadcast %c127_i32 : i32 to vector<1x128xi32>
    %2 = arith.cmpi eq, %0, %1 : vector<1x128xi32>
    %3 = arith.extui %2 : vector<1x128xi1> to vector<1x128xi32>
    %4 = arith.sitofp %3 : vector<1x128xi32> to vector<1x128xf32>
    %c0 = arith.constant 0 : index
    %c0_0 = arith.constant 0 : index
    %5 = vector.load %arg0[%c0, %c0_0] : memref<1x128xf32, #tpu.memory_space<vmem>>, vector<1x128xf32>
    %c0_1 = arith.constant 0 : index
    %c0_2 = arith.constant 0 : index
    %6 = vector.load %arg1[%c0_1, %c0_2] : memref<128x1408xf32, #tpu.memory_space<vmem>>, vector<128x384xf32>
    %cst = arith.constant dense<0.000000e+00> : vector<1x384xf32>
    %7 = tpu.matmul %5, %6, %cst {dimension_numbers = #tpu.dot_dimension_numbers<[1], [0], [0], [1], [0, 0, 1, 1], [], []>} : vector<1x128xf32>, vector<128x384xf32>, vector<1x384xf32> -> vector<1x384xf32>
    %8 = vector.extract_strided_slice %7 {offsets = [0, 0], sizes = [1, 128], strides = [1, 1]} : vector<1x384xf32> to vector<1x128xf32>
    %9 = arith.negf %8 : vector<1x128xf32>
    %10 = math.exp %9 : vector<1x128xf32>
    %cst_3 = arith.constant 1.000000e+00 : f32
    %11 = vector.broadcast %cst_3 : f32 to vector<1x128xf32>
    %12 = arith.addf %11, %10 : vector<1x128xf32>
    %13 = arith.divf %11, %12 : vector<1x128xf32>
    %14 = vector.extract_strided_slice %7 {offsets = [0, 128], sizes = [1, 128], strides = [1, 1]} : vector<1x384xf32> to vector<1x128xf32>
    %15 = math.tanh %14 : vector<1x128xf32>
    %16 = vector.extract_strided_slice %7 {offsets = [0, 256], sizes = [1, 128], strides = [1, 1]} : vector<1x384xf32> to vector<1x128xf32>
    %17 = arith.negf %16 : vector<1x128xf32>
    %18 = math.exp %17 : vector<1x128xf32>
    %cst_4 = arith.constant 1.000000e+00 : f32
    %19 = vector.broadcast %cst_4 : f32 to vector<1x128xf32>
    %20 = arith.addf %19, %18 : vector<1x128xf32>
    %21 = arith.divf %19, %20 : vector<1x128xf32>
    %22 = arith.mulf %13, %15 : vector<1x128xf32>
    %23 = math.tanh %22 : vector<1x128xf32>
    %24 = arith.mulf %21, %23 : vector<1x128xf32>
    %25 = arith.addf %24, %4 : vector<1x128xf32>
    %c0_5 = arith.constant 0 : index
    %c384 = arith.constant 384 : index
    %26 = vector.load %arg1[%c0_5, %c384] : memref<128x1408xf32, #tpu.memory_space<vmem>>, vector<128x384xf32>
    %cst_6 = arith.constant dense<0.000000e+00> : vector<1x384xf32>
    %27 = tpu.matmul %25, %26, %cst_6 {dimension_numbers = #tpu.dot_dimension_numbers<[1], [0], [0], [1], [0, 0, 1, 1], [], []>} : vector<1x128xf32>, vector<128x384xf32>, vector<1x384xf32> -> vector<1x384xf32>
    %28 = vector.extract_strided_slice %27 {offsets = [0, 0], sizes = [1, 128], strides = [1, 1]} : vector<1x384xf32> to vector<1x128xf32>
    %29 = arith.negf %28 : vector<1x128xf32>
    %30 = math.exp %29 : vector<1x128xf32>
    %cst_7 = arith.constant 1.000000e+00 : f32
    %31 = vector.broadcast %cst_7 : f32 to vector<1x128xf32>
    %32 = arith.addf %31, %30 : vector<1x128xf32>
    %33 = arith.divf %31, %32 : vector<1x128xf32>
    %34 = vector.extract_strided_slice %27 {offsets = [0, 128], sizes = [1, 128], strides = [1, 1]} : vector<1x384xf32> to vector<1x128xf32>
    %35 = math.tanh %34 : vector<1x128xf32>
    %36 = vector.extract_strided_slice %27 {offsets = [0, 256], sizes = [1, 128], strides = [1, 1]} : vector<1x384xf32> to vector<1x128xf32>
    %37 = arith.negf %36 : vector<1x128xf32>
    %38 = math.exp %37 : vector<1x128xf32>
    %cst_8 = arith.constant 1.000000e+00 : f32
    %39 = vector.broadcast %cst_8 : f32 to vector<1x128xf32>
    %40 = arith.addf %39, %38 : vector<1x128xf32>
    %41 = arith.divf %39, %40 : vector<1x128xf32>
    %42 = arith.mulf %33, %35 : vector<1x128xf32>
    %43 = math.tanh %42 : vector<1x128xf32>
    %44 = arith.mulf %41, %43 : vector<1x128xf32>
    %45 = arith.addf %44, %4 : vector<1x128xf32>
    %c0_9 = arith.constant 0 : index
    %c768 = arith.constant 768 : index
    %46 = vector.load %arg1[%c0_9, %c768] : memref<128x1408xf32, #tpu.memory_space<vmem>>, vector<128x384xf32>
    %cst_10 = arith.constant dense<0.000000e+00> : vector<1x384xf32>
    %47 = tpu.matmul %45, %46, %cst_10 {dimension_numbers = #tpu.dot_dimension_numbers<[1], [0], [0], [1], [0, 0, 1, 1], [], []>} : vector<1x128xf32>, vector<128x384xf32>, vector<1x384xf32> -> vector<1x384xf32>
    %48 = vector.extract_strided_slice %47 {offsets = [0, 0], sizes = [1, 128], strides = [1, 1]} : vector<1x384xf32> to vector<1x128xf32>
    %49 = arith.negf %48 : vector<1x128xf32>
    %50 = math.exp %49 : vector<1x128xf32>
    %cst_11 = arith.constant 1.000000e+00 : f32
    %51 = vector.broadcast %cst_11 : f32 to vector<1x128xf32>
    %52 = arith.addf %51, %50 : vector<1x128xf32>
    %53 = arith.divf %51, %52 : vector<1x128xf32>
    %54 = vector.extract_strided_slice %47 {offsets = [0, 128], sizes = [1, 128], strides = [1, 1]} : vector<1x384xf32> to vector<1x128xf32>
    %55 = math.tanh %54 : vector<1x128xf32>
    %56 = vector.extract_strided_slice %47 {offsets = [0, 256], sizes = [1, 128], strides = [1, 1]} : vector<1x384xf32> to vector<1x128xf32>
    %57 = arith.negf %56 : vector<1x128xf32>
    %58 = math.exp %57 : vector<1x128xf32>
    %cst_12 = arith.constant 1.000000e+00 : f32
    %59 = vector.broadcast %cst_12 : f32 to vector<1x128xf32>
    %60 = arith.addf %59, %58 : vector<1x128xf32>
    %61 = arith.divf %59, %60 : vector<1x128xf32>
    %62 = arith.mulf %53, %55 : vector<1x128xf32>
    %63 = math.tanh %62 : vector<1x128xf32>
    %64 = arith.mulf %61, %63 : vector<1x128xf32>
    %65 = arith.addf %64, %4 : vector<1x128xf32>
    %c0_13 = arith.constant 0 : index
    %c1152 = arith.constant 1152 : index
    %66 = vector.load %arg1[%c0_13, %c1152] : memref<128x1408xf32, #tpu.memory_space<vmem>>, vector<128x128xf32>
    %cst_14 = arith.constant dense<0.000000e+00> : vector<1x128xf32>
    %67 = tpu.matmul %65, %66, %cst_14 {dimension_numbers = #tpu.dot_dimension_numbers<[1], [0], [0], [1], [0, 0, 1, 1], [], []>} : vector<1x128xf32>, vector<128x128xf32>, vector<1x128xf32> -> vector<1x128xf32>
    %68 = arith.addf %67, %4 : vector<1x128xf32>
    %c0_15 = arith.constant 0 : index
    %c1280 = arith.constant 1280 : index
    %69 = vector.load %arg1[%c0_15, %c1280] : memref<128x1408xf32, #tpu.memory_space<vmem>>, vector<128x128xf32>
    %cst_16 = arith.constant dense<0.000000e+00> : vector<1x128xf32>
    %70 = tpu.matmul %68, %69, %cst_16 {dimension_numbers = #tpu.dot_dimension_numbers<[1], [0], [0], [1], [0, 0, 1, 1], [], []>} : vector<1x128xf32>, vector<128x128xf32>, vector<1x128xf32> -> vector<1x128xf32>
    %71 = vector.extract_strided_slice %70 {offsets = [0, 0], sizes = [1, 2], strides = [1, 1]} : vector<1x128xf32> to vector<1x2xf32>
    %c0_17 = arith.constant 0 : index
    %c0_18 = arith.constant 0 : index
    %72 = vector.load %arg2[%c0_17, %c0_18] : memref<1x2xf32, #tpu.memory_space<vmem>>, vector<1x2xf32>
    tpu.vector_store %arg2[%c0_17, %c0_18], %71 {strides = array<i32>} : memref<1x2xf32, #tpu.memory_space<vmem>>, vector<1x2xf32>,
    return
  }
}

</mosaic_0001>

<llo_original>
// kernel: genblast_forward.1
$region0: #{genblast_forward.1}
  #allocation0 [shape = 'u32[]', space=smem, size = 0x4, offset = 0x4, fixed_abs, tag = 'smem constant byte address 0x4 - core index']
  #allocation1 [shape = 'u32[144,128]{1,0:T(1,128)}', space=vmem, size = 0x12000, scoped, tag = 'internal scratch']
  %s0 = inlined_call_operand.vmem [shape: f32[1,128], index: 0, kind: input, shape index: {}]
  %s1 = inlined_call_operand.hbm [shape: f32[128,1408], index: 1, kind: input, shape index: {}]
  %s2 = inlined_call_operand.hbm [shape: f32[1,2], index: 2, kind: output, shape index: {}]
  %s3 = sld [smem:[#allocation0]]
  $region22: #{genblast_forward.1} parent=0
    _
  %s5 = ssub.s32 1, %s3
  %s6 = scalar_select 0, %s5, %s3
  $region1: #{genblast_forward.1} parent=0
    #allocation2 [shape = 'u8[720896]{0}', space=vmem, size = 0xb0000, scoped, tag = 'input window, operand 1, single buffered']
    #allocation3 [shape = 's32[1]{0}', space=sflag, size = 0x4, scoped, tag = 'scoped memory for genblast_forward.1']
    #allocation4 [shape = 's32[1]{0}', space=sflag, size = 0x4, scoped, tag = 'scoped memory for genblast_forward.1']
    #allocation5 [shape = 'u8[512]{0}', space=vmem, size = 0x400, scoped, tag = 'output window, operand 0, single buffered']
    %7 = vsyncpa [#allocation3], 0
    %8 = vsyncpa [#allocation4], 0
    // Predicated region
    $region2: #{genblast_forward.1} parent=1 // pred_check
      _
    $region3: #{genblast_forward.1} parent=1 // pred_check_branch
      %10 = sbr.rel (0) target = $region5
    $region4: #{genblast_forward.1} parent=1 // pred_region
      _
    $region5: #{genblast_forward.1} parent=1 // pred_fallthru
      _
    // Predicated region
    $region6: #{genblast_forward.1} parent=1 // pred_check
      _
    $region7: #{genblast_forward.1} parent=1 // pred_check_branch
      %12 = sbr.rel (0) target = $region9
    $region8: #{genblast_forward.1} parent=1 // pred_region
      %s14 = ssub.s32 22528, 22528
      %15 = vsyncadd [#allocation3], %s14
      %s16 = sshll.u32 [#allocation2], 4
      %s17 = int_to_ptr.vmem [resolvable:$true] %s16
      %22 = dma.hbm_to_vmem [thread:$0]  %s1, 22528, %s17, [#allocation3], 1408, 1408, 88
    $region9: #{genblast_forward.1} parent=1 // pred_fallthru
      _
    // Predicated region
    $region10: #{genblast_forward.1} parent=1 // pred_check
      _
    $region11: #{genblast_forward.1} parent=1 // pred_check_branch
      %24 = sbr.rel (0) target = $region13
    $region12: #{genblast_forward.1} parent=1 // pred_region
      %25 = dma.done [#allocation3], 22528
    $region13: #{genblast_forward.1} parent=1 // pred_fallthru
      _
    %v26 = vlaneseq
    %v27 = vand.u32 %v26, 127
    %vm28 = vcmp.eq.s32.totalorder %v27, 127
    %v29 = vsel %vm28, 1, 0
    %v30 = vcvt.s32.f32 %v29
    %v31 = vld [vmem:[%s0] sm:$0x1]
    %v32 = vld [vmem:[#allocation2] sm:$0xff]
    %v33 = vld [vmem:[#allocation2 + $0x8] sm:$0xff]
    %v34 = vld [vmem:[#allocation2 + $0x10] sm:$0xff]
    %v35 = vld [vmem:[#allocation2 + $0x58] sm:$0xff]
    %v36 = vld [vmem:[#allocation2 + $0x60] sm:$0xff]
    %v37 = vld [vmem:[#allocation2 + $0x68] sm:$0xff]
    %v38 = vld [vmem:[#allocation2 + $0xb0] sm:$0xff]
    %v39 = vld [vmem:[#allocation2 + $0xb8] sm:$0xff]
    %v40 = vld [vmem:[#allocation2 + $0xc0] sm:$0xff]
    %v41 = vld [vmem:[#allocation2 + $0x108] sm:$0xff]
    %v42 = vld [vmem:[#allocation2 + $0x110] sm:$0xff]
    %v43 = vld [vmem:[#allocation2 + $0x118] sm:$0xff]
    %v44 = vld [vmem:[#allocation2 + $0x160] sm:$0xff]
    %v45 = vld [vmem:[#allocation2 + $0x168] sm:$0xff]
    %v46 = vld [vmem:[#allocation2 + $0x170] sm:$0xff]
    %v47 = vld [vmem:[#allocation2 + $0x1b8] sm:$0xff]
    %v48 = vld [vmem:[#allocation2 + $0x1c0] sm:$0xff]
    %v49 = vld [vmem:[#allocation2 + $0x1c8] sm:$0xff]
    %v50 = vld [vmem:[#allocation2 + $0x210] sm:$0xff]
    %v51 = vld [vmem:[#allocation2 + $0x218] sm:$0xff]
    %v52 = vld [vmem:[#allocation2 + $0x220] sm:$0xff]
    %v53 = vld [vmem:[#allocation2 + $0x268] sm:$0xff]
    %v54 = vld [vmem:[#allocation2 + $0x270] sm:$0xff]
    %v55 = vld [vmem:[#allocation2 + $0x278] sm:$0xff]
    %v56 = vld [vmem:[#allocation2 + $0x2c0] sm:$0xff]
    %v57 = vld [vmem:[#allocation2 + $0x2c8] sm:$0xff]
    %v58 = vld [vmem:[#allocation2 + $0x2d0] sm:$0xff]
    %v59 = vld [vmem:[#allocation2 + $0x318] sm:$0xff]
    %v60 = vld [vmem:[#allocation2 + $0x320] sm:$0xff]
    %v61 = vld [vmem:[#allocation2 + $0x328] sm:$0xff]
    %v62 = vld [vmem:[#allocation2 + $0x370] sm:$0xff]
    %v63 = vld [vmem:[#allocation2 + $0x378] sm:$0xff]
    %v64 = vld [vmem:[#allocation2 + $0x380] sm:$0xff]
    %v65 = vld [vmem:[#allocation2 + $0x3c8] sm:$0xff]
    %v66 = vld [vmem:[#allocation2 + $0x3d0] sm:$0xff]
    %v67 = vld [vmem:[#allocation2 + $0x3d8] sm:$0xff]
    %v68 = vld [vmem:[#allocation2 + $0x420] sm:$0xff]
    %v69 = vld [vmem:[#allocation2 + $0x428] sm:$0xff]
    %v70 = vld [vmem:[#allocation2 + $0x430] sm:$0xff]
    %v71 = vld [vmem:[#allocation2 + $0x478] sm:$0xff]
    %v72 = vld [vmem:[#allocation2 + $0x480] sm:$0xff]
    %v73 = vld [vmem:[#allocation2 + $0x488] sm:$0xff]
    %v74 = vld [vmem:[#allocation2 + $0x4d0] sm:$0xff]
    %v75 = vld [vmem:[#allocation2 + $0x4d8] sm:$0xff]
    %v76 = vld [vmem:[#allocation2 + $0x4e0] sm:$0xff]
    %v77 = vld [vmem:[#allocation2 + $0x528] sm:$0xff]
    %v78 = vld [vmem:[#allocation2 + $0x530] sm:$0xff]
    %v79 = vld [vmem:[#allocation2 + $0x538] sm:$0xff]
    %80 = vmatprep.subr.mxu0 %v78
    %81 = vmatpush1.msra.mxu0 %v77
    %82 = vmatprep.subr.mxu0 %v75
    %83 = vmatpush1.msra.mxu0 %v74
    %84 = vmatprep.subr.mxu0 %v72
    %85 = vmatpush1.msra.mxu0 %v71
    %86 = vmatprep.subr.mxu0 %v69
    %87 = vmatpush1.msra.mxu0 %v68
    %88 = vmatprep.subr.mxu0 %v66
    %89 = vmatpush1.msra.mxu0 %v65
    %90 = vmatprep.subr.mxu0 %v63
    %91 = vmatpush1.msra.mxu0 %v62
    %92 = vmatprep.subr.mxu0 %v60
    %93 = vmatpush1.msra.mxu0 %v59
    %94 = vmatprep.subr.mxu0 %v57
    %95 = vmatpush1.msra.mxu0 %v56
    %96 = vmatprep.subr.mxu0 %v54
    %97 = vmatpush1.msra.mxu0 %v53
    %98 = vmatprep.subr.mxu0 %v51
    %99 = vmatpush1.msra.mxu0 %v50
    %100 = vmatprep.subr.mxu0 %v48
    %101 = vmatpush1.msra.mxu0 %v47
    %102 = vmatprep.subr.mxu0 %v45
    %103 = vmatpush1.msra.mxu0 %v44
    %104 = vmatprep.subr.mxu0 %v42
    %105 = vmatpush1.msra.mxu0 %v41
    %106 = vmatprep.subr.mxu0 %v39
    %107 = vmatpush1.msra.mxu0 %v38
    %108 = vmatprep.subr.mxu0 %v36
    %109 = vmatpush1.msra.mxu0 %v35
    %110 = vmatprep.subr.mxu0 %v33
    %111 = vmatpush1.msra.mxu0 %v32
    %112 = vmatprep.subr.mxu0 0.0
    %113 = vmatpush2.msra.mxu0 0.0
    %114 = vmatprep.subr.mxu0 0.0
    %115 = vmatpush2.msra.mxu0 0.0
    %116 = vmatprep.subr.mxu0 0.0
    %117 = vmatpush2.msra.mxu0 0.0
    %118 = vmatprep.subr.mxu0 0.0
    %119 = vmatpush2.msra.mxu0 0.0
    %120 = vmatprep.subr.mxu0 0.0
    %121 = vmatpush2.msra.mxu0 0.0
    %122 = vmatprep.subr.mxu0 0.0
    %123 = vmatpush2.msra.mxu0 0.0
    %124 = vmatprep.subr.mxu0 0.0
    %125 = vmatpush2.msra.mxu0 0.0
    %126 = vmatprep.subr.mxu0 0.0
    %127 = vmatpush2.msra.mxu0 0.0
    %128 = vmatprep.subr.mxu0 0.0
    %129 = vmatpush2.msra.mxu0 0.0
    %130 = vmatprep.subr.mxu0 0.0
    %131 = vmatpush2.msra.mxu0 0.0
    %132 = vmatprep.subr.mxu0 0.0
    %133 = vmatpush2.msra.mxu0 0.0
    %134 = vmatprep.subr.mxu0 0.0
    %135 = vmatpush2.msra.mxu0 0.0
    %136 = vmatprep.subr.mxu0 0.0
    %137 = vmatpush2.msra.mxu0 0.0
    %138 = vmatprep.subr.mxu0 0.0
    %139 = vmatpush2.msra.mxu0 0.0
    %140 = vmatprep.subr.mxu0 0.0
    %141 = vmatpush2.msra.mxu0 0.0
    %142 = vmatprep.subr.mxu0 0.0
    %143 = vmatpush2.msra.mxu0 0.0
    %144 = vmatprep.mubr.f32.mxu0 0.0
    %145 = vmatmul.mubr.f32.gmra.mxu0 %v31
    %v146 = vpop.f32.mrf.mxu0
    %v147 = vadd.f32 0.0, %v146
    %v148 = vpop.f32.mrf.mxu0
    %v149 = vadd.f32 0.0, %v148
    %150 = vdwg.mxu0
    %151 = vmatprep.subr.mxu0 0.0
    %152 = vmatpush1.msra.mxu0 %v79
    %153 = vmatprep.subr.mxu0 0.0
    %154 = vmatpush1.msra.mxu0 %v76
    %155 = vmatprep.subr.mxu0 0.0
    %156 = vmatpush1.msra.mxu0 %v73
    %157 = vmatprep.subr.mxu0 0.0
    %158 = vmatpush1.msra.mxu0 %v70
    %159 = vmatprep.subr.mxu0 0.0
    %160 = vmatpush1.msra.mxu0 %v67
    %161 = vmatprep.subr.mxu0 0.0
    %162 = vmatpush1.msra.mxu0 %v64
    %163 = vmatprep.subr.mxu0 0.0
    %164 = vmatpush1.msra.mxu0 %v61
    %165 = vmatprep.subr.mxu0 0.0
    %166 = vmatpush1.msra.mxu0 %v58
    %167 = vmatprep.subr.mxu0 0.0
    %168 = vmatpush1.msra.mxu0 %v55
    %169 = vmatprep.subr.mxu0 0.0
    %170 = vmatpush1.msra.mxu0 %v52
    %171 = vmatprep.subr.mxu0 0.0
    %172 = vmatpush1.msra.mxu0 %v49
    %173 = vmatprep.subr.mxu0 0.0
    %174 = vmatpush1.msra.mxu0 %v46
    %175 = vmatprep.subr.mxu0 0.0
    %176 = vmatpush1.msra.mxu0 %v43
    %177 = vmatprep.subr.mxu0 0.0
    %178 = vmatpush1.msra.mxu0 %v40
    %179 = vmatprep.subr.mxu0 0.0
    %180 = vmatpush1.msra.mxu0 %v37
    %181 = vmatprep.subr.mxu0 0.0
    %182 = vmatpush1.msra.mxu0 %v34
    %183 = vmatprep.subr.mxu0 0.0
    %184 = vmatpush2.msra.mxu0 0.0
    %185 = vmatprep.subr.mxu0 0.0
    %186 = vmatpush2.msra.mxu0 0.0
    %187 = vmatprep.subr.mxu0 0.0
    %188 = vmatpush2.msra.mxu0 0.0
    %189 = vmatprep.subr.mxu0 0.0
    %190 = vmatpush2.msra.mxu0 0.0
    %191 = vmatprep.subr.mxu0 0.0
    %192 = vmatpush2.msra.mxu0 0.0
    %193 = vmatprep.subr.mxu0 0.0
    %194 = vmatpush2.msra.mxu0 0.0
    %195 = vmatprep.subr.mxu0 0.0
    %196 = vmatpush2.msra.mxu0 0.0
    %197 = vmatprep.subr.mxu0 0.0
    %198 = vmatpush2.msra.mxu0 0.0
    %199 = vmatprep.subr.mxu0 0.0
    %200 = vmatpush2.msra.mxu0 0.0
    %201 = vmatprep.subr.mxu0 0.0
    %202 = vmatpush2.msra.mxu0 0.0
    %203 = vmatprep.subr.mxu0 0.0
    %204 = vmatpush2.msra.mxu0 0.0
    %205 = vmatprep.subr.mxu0 0.0
    %206 = vmatpush2.msra.mxu0 0.0
    %207 = vmatprep.subr.mxu0 0.0
    %208 = vmatpush2.msra.mxu0 0.0
    %209 = vmatprep.subr.mxu0 0.0
    %210 = vmatpush2.msra.mxu0 0.0
    %211 = vmatprep.subr.mxu0 0.0
    %212 = vmatpush2.msra.mxu0 0.0
    %213 = vmatprep.subr.mxu0 0.0
    %214 = vmatpush2.msra.mxu0 0.0
    %215 = vmatprep.mubr.f32.mxu0 0.0
    %216 = vmatmul.mubr.f32.gmra.mxu0 %v31
    %v217 = vpop.f32.mrf.mxu0
    %v218 = vadd.f32 0.0, %v217
    %v219 = vpop.f32.mrf.mxu0
    %220 = vdwg.mxu0
    %v221 = vxor.u32 %v147, 2147483648
    %v222 = vmul.f32 %v221, 1.442695
    %v223 = vpow.pop %v222
    %v224 = vadd.f32 %v223, 1.0
    %v225 = vrcp.pop %v224
    %v226 = vmul.f32 1.0, %v225
    %v227 = vtanh.pop %v149
    %v228 = vxor.u32 %v218, 2147483648
    %v229 = vmul.f32 %v228, 1.442695
    %v230 = vpow.pop %v229
    %v231 = vadd.f32 %v230, 1.0
    %v232 = vrcp.pop %v231
    %v233 = vmul.f32 1.0, %v232
    %v234 = vmul.f32 %v226, %v227
    %v235 = vtanh.pop %v234
    %v236 = vmul.f32 %v233, %v235
    %v237 = vadd.f32 %v236, %v30
    %v238 = vld [vmem:[#allocation2 + $0x18] sm:$0xff]
    %v239 = vld [vmem:[#allocation2 + $0x20] sm:$0xff]
    %v240 = vld [vmem:[#allocation2 + $0x28] sm:$0xff]
    %v241 = vld [vmem:[#allocation2 + $0x70] sm:$0xff]
    %v242 = vld [vmem:[#allocation2 + $0x78] sm:$0xff]
    %v243 = vld [vmem:[#allocation2 + $0x80] sm:$0xff]
    %v244 = vld [vmem:[#allocation2 + $0xc8] sm:$0xff]
    %v245 = vld [vmem:[#allocation2 + $0xd0] sm:$0xff]
    %v246 = vld [vmem:[#allocation2 + $0xd8] sm:$0xff]
    %v247 = vld [vmem:[#allocation2 + $0x120] sm:$0xff]
    %v248 = vld [vmem:[#allocation2 + $0x128] sm:$0xff]
    %v249 = vld [vmem:[#allocation2 + $0x130] sm:$0xff]
    %v250 = vld [vmem:[#allocation2 + $0x178] sm:$0xff]
    %v251 = vld [vmem:[#allocation2 + $0x180] sm:$0xff]
    %v252 = vld [vmem:[#allocation2 + $0x188] sm:$0xff]
    %v253 = vld [vmem:[#allocation2 + $0x1d0] sm:$0xff]
    %v254 = vld [vmem:[#allocation2 + $0x1d8] sm:$0xff]
    %v255 = vld [vmem:[#allocation2 + $0x1e0] sm:$0xff]
    %v256 = vld [vmem:[#allocation2 + $0x228] sm:$0xff]
    %v257 = vld [vmem:[#allocation2 + $0x230] sm:$0xff]
    %v258 = vld [vmem:[#allocation2 + $0x238] sm:$0xff]
    %v259 = vld [vmem:[#allocation2 + $0x280] sm:$0xff]
    %v260 = vld [vmem:[#allocation2 + $0x288] sm:$0xff]
    %v261 = vld [vmem:[#allocation2 + $0x290] sm:$0xff]
    %v262 = vld [vmem:[#allocation2 + $0x2d8] sm:$0xff]
    %v263 = vld [vmem:[#allocation2 + $0x2e0] sm:$0xff]
    %v264 = vld [vmem:[#allocation2 + $0x2e8] sm:$0xff]
    %v265 = vld [vmem:[#allocation2 + $0x330] sm:$0xff]
    %v266 = vld [vmem:[#allocation2 + $0x338] sm:$0xff]
    %v267 = vld [vmem:[#allocation2 + $0x340] sm:$0xff]
    %v268 = vld [vmem:[#allocation2 + $0x388] sm:$0xff]
    %v269 = vld [vmem:[#allocation2 + $0x390] sm:$0xff]
    %v270 = vld [vmem:[#allocation2 + $0x398] sm:$0xff]
    %v271 = vld [vmem:[#allocation2 + $0x3e0] sm:$0xff]
    %v272 = vld [vmem:[#allocation2 + $0x3e8] sm:$0xff]
    %v273 = vld [vmem:[#allocation2 + $0x3f0] sm:$0xff]
    %v274 = vld [vmem:[#allocation2 + $0x438] sm:$0xff]
    %v275 = vld [vmem:[#allocation2 + $0x440] sm:$0xff]
    %v276 = vld [vmem:[#allocation2 + $0x448] sm:$0xff]
    %v277 = vld [vmem:[#allocation2 + $0x490] sm:$0xff]
    %v278 = vld [vmem:[#allocation2 + $0x498] sm:$0xff]
    %v279 = vld [vmem:[#allocation2 + $0x4a0] sm:$0xff]
    %v280 = vld [vmem:[#allocation2 + $0x4e8] sm:$0xff]
    %v281 = vld [vmem:[#allocation2 + $0x4f0] sm:$0xff]
    %v282 = vld [vmem:[#allocation2 + $0x4f8] sm:$0xff]
    %v283 = vld [vmem:[#allocation2 + $0x540] sm:$0xff]
    %v284 = vld [vmem:[#allocation2 + $0x548] sm:$0xff]
    %v285 = vld [vmem:[#allocation2 + $0x550] sm:$0xff]
    %286 = vmatprep.subr.mxu0 %v284
    %287 = vmatpush1.msra.mxu0 %v283
    %288 = vmatprep.subr.mxu0 %v281
    %289 = vmatpush1.msra.mxu0 %v280
    %290 = vmatprep.subr.mxu0 %v278
    %291 = vmatpush1.msra.mxu0 %v277
    %292 = vmatprep.subr.mxu0 %v275
    %293 = vmatpush1.msra.mxu0 %v274
    %294 = vmatprep.subr.mxu0 %v272
    %295 = vmatpush1.msra.mxu0 %v271
    %296 = vmatprep.subr.mxu0 %v269
    %297 = vmatpush1.msra.mxu0 %v268
    %298 = vmatprep.subr.mxu0 %v266
    %299 = vmatpush1.msra.mxu0 %v265
    %300 = vmatprep.subr.mxu0 %v263
    %301 = vmatpush1.msra.mxu0 %v262
    %302 = vmatprep.subr.mxu0 %v260
    %303 = vmatpush1.msra.mxu0 %v259
    %304 = vmatprep.subr.mxu0 %v257
    %305 = vmatpush1.msra.mxu0 %v256
    %306 = vmatprep.subr.mxu0 %v254
    %307 = vmatpush1.msra.mxu0 %v253
    %308 = vmatprep.subr.mxu0 %v251
    %309 = vmatpush1.msra.mxu0 %v250
    %310 = vmatprep.subr.mxu0 %v248
    %311 = vmatpush1.msra.mxu0 %v247
    %312 = vmatprep.subr.mxu0 %v245
    %313 = vmatpush1.msra.mxu0 %v244
    %314 = vmatprep.subr.mxu0 %v242
    %315 = vmatpush1.msra.mxu0 %v241
    %316 = vmatprep.subr.mxu0 %v239
    %317 = vmatpush1.msra.mxu0 %v238
    %318 = vmatprep.subr.mxu0 0.0
    %319 = vmatpush2.msra.mxu0 0.0
    %320 = vmatprep.subr.mxu0 0.0
    %321 = vmatpush2.msra.mxu0 0.0
    %322 = vmatprep.subr.mxu0 0.0
    %323 = vmatpush2.msra.mxu0 0.0
    %324 = vmatprep.subr.mxu0 0.0
    %325 = vmatpush2.msra.mxu0 0.0
    %326 = vmatprep.subr.mxu0 0.0
    %327 = vmatpush2.msra.mxu0 0.0
    %328 = vmatprep.subr.mxu0 0.0
    %329 = vmatpush2.msra.mxu0 0.0
    %330 = vmatprep.subr.mxu0 0.0
    %331 = vmatpush2.msra.mxu0 0.0
    %332 = vmatprep.subr.mxu0 0.0
    %333 = vmatpush2.msra.mxu0 0.0
    %334 = vmatprep.subr.mxu0 0.0
    %335 = vmatpush2.msra.mxu0 0.0
    %336 = vmatprep.subr.mxu0 0.0
    %337 = vmatpush2.msra.mxu0 0.0
    %338 = vmatprep.subr.mxu0 0.0
    %339 = vmatpush2.msra.mxu0 0.0
    %340 = vmatprep.subr.mxu0 0.0
    %341 = vmatpush2.msra.mxu0 0.0
    %342 = vmatprep.subr.mxu0 0.0
    %343 = vmatpush2.msra.mxu0 0.0
    %344 = vmatprep.subr.mxu0 0.0
    %345 = vmatpush2.msra.mxu0 0.0
    %346 = vmatprep.subr.mxu0 0.0
    %347 = vmatpush2.msra.mxu0 0.0
    %348 = vmatprep.subr.mxu0 0.0
    %349 = vmatpush2.msra.mxu0 0.0
    %350 = vmatprep.mubr.f32.mxu0 0.0
    %351 = vmatmul.mubr.f32.gmra.mxu0 %v237
    %v352 = vpop.f32.mrf.mxu0
    %v353 = vadd.f32 0.0, %v352
    %v354 = vpop.f32.mrf.mxu0
    %v355 = vadd.f32 0.0, %v354
    %356 = vdwg.mxu0
    %357 = vmatprep.subr.mxu0 0.0
    %358 = vmatpush1.msra.mxu0 %v285
    %359 = vmatprep.subr.mxu0 0.0
    %360 = vmatpush1.msra.mxu0 %v282
    %361 = vmatprep.subr.mxu0 0.0
    %362 = vmatpush1.msra.mxu0 %v279
    %363 = vmatprep.subr.mxu0 0.0
    %364 = vmatpush1.msra.mxu0 %v276
    %365 = vmatprep.subr.mxu0 0.0
    %366 = vmatpush1.msra.mxu0 %v273
    %367 = vmatprep.subr.mxu0 0.0
    %368 = vmatpush1.msra.mxu0 %v270
    %369 = vmatprep.subr.mxu0 0.0
    %370 = vmatpush1.msra.mxu0 %v267
    %371 = vmatprep.subr.mxu0 0.0
    %372 = vmatpush1.msra.mxu0 %v264
    %373 = vmatprep.subr.mxu0 0.0
    %374 = vmatpush1.msra.mxu0 %v261
    %375 = vmatprep.subr.mxu0 0.0
    %376 = vmatpush1.msra.mxu0 %v258
    %377 = vmatprep.subr.mxu0 0.0
    %378 = vmatpush1.msra.mxu0 %v255
    %379 = vmatprep.subr.mxu0 0.0
    %380 = vmatpush1.msra.mxu0 %v252
    %381 = vmatprep.subr.mxu0 0.0
    %382 = vmatpush1.msra.mxu0 %v249
    %383 = vmatprep.subr.mxu0 0.0
    %384 = vmatpush1.msra.mxu0 %v246
    %385 = vmatprep.subr.mxu0 0.0
    %386 = vmatpush1.msra.mxu0 %v243
    %387 = vmatprep.subr.mxu0 0.0
    %388 = vmatpush1.msra.mxu0 %v240
    %389 = vmatprep.subr.mxu0 0.0
    %390 = vmatpush2.msra.mxu0 0.0
    %391 = vmatprep.subr.mxu0 0.0
    %392 = vmatpush2.msra.mxu0 0.0
    %393 = vmatprep.subr.mxu0 0.0
    %394 = vmatpush2.msra.mxu0 0.0
    %395 = vmatprep.subr.mxu0 0.0
    %396 = vmatpush2.msra.mxu0 0.0
    %397 = vmatprep.subr.mxu0 0.0
    %398 = vmatpush2.msra.mxu0 0.0
    %399 = vmatprep.subr.mxu0 0.0
    %400 = vmatpush2.msra.mxu0 0.0
    %401 = vmatprep.subr.mxu0 0.0
    %402 = vmatpush2.msra.mxu0 0.0
    %403 = vmatprep.subr.mxu0 0.0
    %404 = vmatpush2.msra.mxu0 0.0
    %405 = vmatprep.subr.mxu0 0.0
    %406 = vmatpush2.msra.mxu0 0.0
    %407 = vmatprep.subr.mxu0 0.0
    %408 = vmatpush2.msra.mxu0 0.0
    %409 = vmatprep.subr.mxu0 0.0
    %410 = vmatpush2.msra.mxu0 0.0
    %411 = vmatprep.subr.mxu0 0.0
    %412 = vmatpush2.msra.mxu0 0.0
    %413 = vmatprep.subr.mxu0 0.0
    %414 = vmatpush2.msra.mxu0 0.0
    %415 = vmatprep.subr.mxu0 0.0
    %416 = vmatpush2.msra.mxu0 0.0
    %417 = vmatprep.subr.mxu0 0.0
    %418 = vmatpush2.msra.mxu0 0.0
    %419 = vmatprep.subr.mxu0 0.0
    %420 = vmatpush2.msra.mxu0 0.0
    %421 = vmatprep.mubr.f32.mxu0 0.0
    %422 = vmatmul.mubr.f32.gmra.mxu0 %v237
    %v423 = vpop.f32.mrf.mxu0
    %v424 = vadd.f32 0.0, %v423
    %v425 = vpop.f32.mrf.mxu0
    %426 = vdwg.mxu0
    %v427 = vxor.u32 %v353, 2147483648
    %v428 = vmul.f32 %v427, 1.442695
    %v429 = vpow.pop %v428
    %v430 = vadd.f32 %v429, 1.0
    %v431 = vrcp.pop %v430
    %v432 = vmul.f32 1.0, %v431
    %v433 = vtanh.pop %v355
    %v434 = vxor.u32 %v424, 2147483648
    %v435 = vmul.f32 %v434, 1.442695
    %v436 = vpow.pop %v435
    %v437 = vadd.f32 %v436, 1.0
    %v438 = vrcp.pop %v437
    %v439 = vmul.f32 1.0, %v438
    %v440 = vmul.f32 %v432, %v433
    %v441 = vtanh.pop %v440
    %v442 = vmul.f32 %v439, %v441
    %v443 = vadd.f32 %v442, %v30
    %v444 = vld [vmem:[#allocation2 + $0x30] sm:$0xff]
    %v445 = vld [vmem:[#allocation2 + $0x38] sm:$0xff]
    %v446 = vld [vmem:[#allocation2 + $0x40] sm:$0xff]
    %v447 = vld [vmem:[#allocation2 + $0x88] sm:$0xff]
    %v448 = vld [vmem:[#allocation2 + $0x90] sm:$0xff]
    %v449 = vld [vmem:[#allocation2 + $0x98] sm:$0xff]
    %v450 = vld [vmem:[#allocation2 + $0xe0] sm:$0xff]
    %v451 = vld [vmem:[#allocation2 + $0xe8] sm:$0xff]
    %v452 = vld [vmem:[#allocation2 + $0xf0] sm:$0xff]
    %v453 = vld [vmem:[#allocation2 + $0x138] sm:$0xff]
    %v454 = vld [vmem:[#allocation2 + $0x140] sm:$0xff]
    %v455 = vld [vmem:[#allocation2 + $0x148] sm:$0xff]
    %v456 = vld [vmem:[#allocation2 + $0x190] sm:$0xff]
    %v457 = vld [vmem:[#allocation2 + $0x198] sm:$0xff]
    %v458 = vld [vmem:[#allocation2 + $0x1a0] sm:$0xff]
    %v459 = vld [vmem:[#allocation2 + $0x1e8] sm:$0xff]
    %v460 = vld [vmem:[#allocation2 + $0x1f0] sm:$0xff]
    %v461 = vld [vmem:[#allocation2 + $0x1f8] sm:$0xff]
    %v462 = vld [vmem:[#allocation2 + $0x240] sm:$0xff]
    %v463 = vld [vmem:[#allocation2 + $0x248] sm:$0xff]
    %v464 = vld [vmem:[#allocation2 + $0x250] sm:$0xff]
    %v465 = vld [vmem:[#allocation2 + $0x298] sm:$0xff]
    %v466 = vld [vmem:[#allocation2 + $0x2a0] sm:$0xff]
    %v467 = vld [vmem:[#allocation2 + $0x2a8] sm:$0xff]
    %v468 = vld [vmem:[#allocation2 + $0x2f0] sm:$0xff]
    %v469 = vld [vmem:[#allocation2 + $0x2f8] sm:$0xff]
    %v470 = vld [vmem:[#allocation2 + $0x300] sm:$0xff]
    %v471 = vld [vmem:[#allocation2 + $0x348] sm:$0xff]
    %v472 = vld [vmem:[#allocation2 + $0x350] sm:$0xff]
    %v473 = vld [vmem:[#allocation2 + $0x358] sm:$0xff]
    %v474 = vld [vmem:[#allocation2 + $0x3a0] sm:$0xff]
    %v475 = vld [vmem:[#allocation2 + $0x3a8] sm:$0xff]
    %v476 = vld [vmem:[#allocation2 + $0x3b0] sm:$0xff]
    %v477 = vld [vmem:[#allocation2 + $0x3f8] sm:$0xff]
    %v478 = vld [vmem:[#allocation2 + $0x400] sm:$0xff]
    %v479 = vld [vmem:[#allocation2 + $0x408] sm:$0xff]
    %v480 = vld [vmem:[#allocation2 + $0x450] sm:$0xff]
    %v481 = vld [vmem:[#allocation2 + $0x458] sm:$0xff]
    %v482 = vld [vmem:[#allocation2 + $0x460] sm:$0xff]
    %v483 = vld [vmem:[#allocation2 + $0x4a8] sm:$0xff]
    %v484 = vld [vmem:[#allocation2 + $0x4b0] sm:$0xff]
    %v485 = vld [vmem:[#allocation2 + $0x4b8] sm:$0xff]
    %v486 = vld [vmem:[#allocation2 + $0x500] sm:$0xff]
    %v487 = vld [vmem:[#allocation2 + $0x508] sm:$0xff]
    %v488 = vld [vmem:[#allocation2 + $0x510] sm:$0xff]
    %v489 = vld [vmem:[#allocation2 + $0x558] sm:$0xff]
    %v490 = vld [vmem:[#allocation2 + $0x560] sm:$0xff]
    %v491 = vld [vmem:[#allocation2 + $0x568] sm:$0xff]
    %492 = vmatprep.subr.mxu0 %v490
    %493 = vmatpush1.msra.mxu0 %v489
    %494 = vmatprep.subr.mxu0 %v487
    %495 = vmatpush1.msra.mxu0 %v486
    %496 = vmatprep.subr.mxu0 %v484
    %497 = vmatpush1.msra.mxu0 %v483
    %498 = vmatprep.subr.mxu0 %v481
    %499 = vmatpush1.msra.mxu0 %v480
    %500 = vmatprep.subr.mxu0 %v478
    %501 = vmatpush1.msra.mxu0 %v477
    %502 = vmatprep.subr.mxu0 %v475
    %503 = vmatpush1.msra.mxu0 %v474
    %504 = vmatprep.subr.mxu0 %v472
    %505 = vmatpush1.msra.mxu0 %v471
    %506 = vmatprep.subr.mxu0 %v469
    %507 = vmatpush1.msra.mxu0 %v468
    %508 = vmatprep.subr.mxu0 %v466
    %509 = vmatpush1.msra.mxu0 %v465
    %510 = vmatprep.subr.mxu0 %v463
    %511 = vmatpush1.msra.mxu0 %v462
    %512 = vmatprep.subr.mxu0 %v460
    %513 = vmatpush1.msra.mxu0 %v459
    %514 = vmatprep.subr.mxu0 %v457
    %515 = vmatpush1.msra.mxu0 %v456
    %516 = vmatprep.subr.mxu0 %v454
    %517 = vmatpush1.msra.mxu0 %v453
    %518 = vmatprep.subr.mxu0 %v451
    %519 = vmatpush1.msra.mxu0 %v450
    %520 = vmatprep.subr.mxu0 %v448
    %521 = vmatpush1.msra.mxu0 %v447
    %522 = vmatprep.subr.mxu0 %v445
    %523 = vmatpush1.msra.mxu0 %v444
    %524 = vmatprep.subr.mxu0 0.0
    %525 = vmatpush2.msra.mxu0 0.0
    %526 = vmatprep.subr.mxu0 0.0
    %527 = vmatpush2.msra.mxu0 0.0
    %528 = vmatprep.subr.mxu0 0.0
    %529 = vmatpush2.msra.mxu0 0.0
    %530 = vmatprep.subr.mxu0 0.0
    %531 = vmatpush2.msra.mxu0 0.0
    %532 = vmatprep.subr.mxu0 0.0
    %533 = vmatpush2.msra.mxu0 0.0
    %534 = vmatprep.subr.mxu0 0.0
    %535 = vmatpush2.msra.mxu0 0.0
    %536 = vmatprep.subr.mxu0 0.0
    %537 = vmatpush2.msra.mxu0 0.0
    %538 = vmatprep.subr.mxu0 0.0
    %539 = vmatpush2.msra.mxu0 0.0
    %540 = vmatprep.subr.mxu0 0.0
    %541 = vmatpush2.msra.mxu0 0.0
    %542 = vmatprep.subr.mxu0 0.0
    %543 = vmatpush2.msra.mxu0 0.0
    %544 = vmatprep.subr.mxu0 0.0
    %545 = vmatpush2.msra.mxu0 0.0
    %546 = vmatprep.subr.mxu0 0.0
    %547 = vmatpush2.msra.mxu0 0.0
    %548 = vmatprep.subr.mxu0 0.0
    %549 = vmatpush2.msra.mxu0 0.0
    %550 = vmatprep.subr.mxu0 0.0
    %551 = vmatpush2.msra.mxu0 0.0
    %552 = vmatprep.subr.mxu0 0.0
    %553 = vmatpush2.msra.mxu0 0.0
    %554 = vmatprep.subr.mxu0 0.0
    %555 = vmatpush2.msra.mxu0 0.0
    %556 = vmatprep.mubr.f32.mxu0 0.0
    %557 = vmatmul.mubr.f32.gmra.mxu0 %v443
    %v558 = vpop.f32.mrf.mxu0
    %v559 = vadd.f32 0.0, %v558
    %v560 = vpop.f32.mrf.mxu0
    %v561 = vadd.f32 0.0, %v560
    %562 = vdwg.mxu0
    %563 = vmatprep.subr.mxu0 0.0
    %564 = vmatpush1.msra.mxu0 %v491
    %565 = vmatprep.subr.mxu0 0.0
    %566 = vmatpush1.msra.mxu0 %v488
    %567 = vmatprep.subr.mxu0 0.0
    %568 = vmatpush1.msra.mxu0 %v485
    %569 = vmatprep.subr.mxu0 0.0
    %570 = vmatpush1.msra.mxu0 %v482
    %571 = vmatprep.subr.mxu0 0.0
    %572 = vmatpush1.msra.mxu0 %v479
    %573 = vmatprep.subr.mxu0 0.0
    %574 = vmatpush1.msra.mxu0 %v476
    %575 = vmatprep.subr.mxu0 0.0
    %576 = vmatpush1.msra.mxu0 %v473
    %577 = vmatprep.subr.mxu0 0.0
    %578 = vmatpush1.msra.mxu0 %v470
    %579 = vmatprep.subr.mxu0 0.0
    %580 = vmatpush1.msra.mxu0 %v467
    %581 = vmatprep.subr.mxu0 0.0
    %582 = vmatpush1.msra.mxu0 %v464
    %583 = vmatprep.subr.mxu0 0.0
    %584 = vmatpush1.msra.mxu0 %v461
    %585 = vmatprep.subr.mxu0 0.0
    %586 = vmatpush1.msra.mxu0 %v458
    %587 = vmatprep.subr.mxu0 0.0
    %588 = vmatpush1.msra.mxu0 %v455
    %589 = vmatprep.subr.mxu0 0.0
    %590 = vmatpush1.msra.mxu0 %v452
    %591 = vmatprep.subr.mxu0 0.0
    %592 = vmatpush1.msra.mxu0 %v449
    %593 = vmatprep.subr.mxu0 0.0
    %594 = vmatpush1.msra.mxu0 %v446
    %595 = vmatprep.subr.mxu0 0.0
    %596 = vmatpush2.msra.mxu0 0.0
    %597 = vmatprep.subr.mxu0 0.0
    %598 = vmatpush2.msra.mxu0 0.0
    %599 = vmatprep.subr.mxu0 0.0
    %600 = vmatpush2.msra.mxu0 0.0
    %601 = vmatprep.subr.mxu0 0.0
    %602 = vmatpush2.msra.mxu0 0.0
    %603 = vmatprep.subr.mxu0 0.0
    %604 = vmatpush2.msra.mxu0 0.0
    %605 = vmatprep.subr.mxu0 0.0
    %606 = vmatpush2.msra.mxu0 0.0
    %607 = vmatprep.subr.mxu0 0.0
    %608 = vmatpush2.msra.mxu0 0.0
    %609 = vmatprep.subr.mxu0 0.0
    %610 = vmatpush2.msra.mxu0 0.0
    %611 = vmatprep.subr.mxu0 0.0
    %612 = vmatpush2.msra.mxu0 0.0
    %613 = vmatprep.subr.mxu0 0.0
    %614 = vmatpush2.msra.mxu0 0.0
    %615 = vmatprep.subr.mxu0 0.0
    %616 = vmatpush2.msra.mxu0 0.0
    %617 = vmatprep.subr.mxu0 0.0
    %618 = vmatpush2.msra.mxu0 0.0
    %619 = vmatprep.subr.mxu0 0.0
    %620 = vmatpush2.msra.mxu0 0.0
    %621 = vmatprep.subr.mxu0 0.0
    %622 = vmatpush2.msra.mxu0 0.0
    %623 = vmatprep.subr.mxu0 0.0
    %624 = vmatpush2.msra.mxu0 0.0
    %625 = vmatprep.subr.mxu0 0.0
    %626 = vmatpush2.msra.mxu0 0.0
    %627 = vmatprep.mubr.f32.mxu0 0.0
    %628 = vmatmul.mubr.f32.gmra.mxu0 %v443
    %v629 = vpop.f32.mrf.mxu0
    %v630 = vadd.f32 0.0, %v629
    %v631 = vpop.f32.mrf.mxu0
    %632 = vdwg.mxu0
    %v633 = vxor.u32 %v559, 2147483648
    %v634 = vmul.f32 %v633, 1.442695
    %v635 = vpow.pop %v634
    %v636 = vadd.f32 %v635, 1.0
    %v637 = vrcp.pop %v636
    %v638 = vmul.f32 1.0, %v637
    %v639 = vtanh.pop %v561
    %v640 = vxor.u32 %v630, 2147483648
    %v641 = vmul.f32 %v640, 1.442695
    %v642 = vpow.pop %v641
    %v643 = vadd.f32 %v642, 1.0
    %v644 = vrcp.pop %v643
    %v645 = vmul.f32 1.0, %v644
    %v646 = vmul.f32 %v638, %v639
    %v647 = vtanh.pop %v646
    %v648 = vmul.f32 %v645, %v647
    %v649 = vadd.f32 %v648, %v30
    %v650 = vld [vmem:[#allocation2 + $0x48] sm:$0xff]
    %v651 = vld [vmem:[#allocation2 + $0xa0] sm:$0xff]
    %v652 = vld [vmem:[#allocation2 + $0xf8] sm:$0xff]
    %v653 = vld [vmem:[#allocation2 + $0x150] sm:$0xff]
    %v654 = vld [vmem:[#allocation2 + $0x1a8] sm:$0xff]
    %v655 = vld [vmem:[#allocation2 + $0x200] sm:$0xff]
    %v656 = vld [vmem:[#allocation2 + $0x258] sm:$0xff]
    %v657 = vld [vmem:[#allocation2 + $0x2b0] sm:$0xff]
    %v658 = vld [vmem:[#allocation2 + $0x308] sm:$0xff]
    %v659 = vld [vmem:[#allocation2 + $0x360] sm:$0xff]
    %v660 = vld [vmem:[#allocation2 + $0x3b8] sm:$0xff]
    %v661 = vld [vmem:[#allocation2 + $0x410] sm:$0xff]
    %v662 = vld [vmem:[#allocation2 + $0x468] sm:$0xff]
    %v663 = vld [vmem:[#allocation2 + $0x4c0] sm:$0xff]
    %v664 = vld [vmem:[#allocation2 + $0x518] sm:$0xff]
    %v665 = vld [vmem:[#allocation2 + $0x570] sm:$0xff]
    %666 = vmatprep.subr.mxu0 0.0
    %667 = vmatpush1.msra.mxu0 %v665
    %668 = vmatprep.subr.mxu0 0.0
    %669 = vmatpush1.msra.mxu0 %v664
    %670 = vmatprep.subr.mxu0 0.0
    %671 = vmatpush1.msra.mxu0 %v663
    %672 = vmatprep.subr.mxu0 0.0
    %673 = vmatpush1.msra.mxu0 %v662
    %674 = vmatprep.subr.mxu0 0.0
    %675 = vmatpush1.msra.mxu0 %v661
    %676 = vmatprep.subr.mxu0 0.0
    %677 = vmatpush1.msra.mxu0 %v660
    %678 = vmatprep.subr.mxu0 0.0
    %679 = vmatpush1.msra.mxu0 %v659
    %680 = vmatprep.subr.mxu0 0.0
    %681 = vmatpush1.msra.mxu0 %v658
    %682 = vmatprep.subr.mxu0 0.0
    %683 = vmatpush1.msra.mxu0 %v657
    %684 = vmatprep.subr.mxu0 0.0
    %685 = vmatpush1.msra.mxu0 %v656
    %686 = vmatprep.subr.mxu0 0.0
    %687 = vmatpush1.msra.mxu0 %v655
    %688 = vmatprep.subr.mxu0 0.0
    %689 = vmatpush1.msra.mxu0 %v654
    %690 = vmatprep.subr.mxu0 0.0
    %691 = vmatpush1.msra.mxu0 %v653
    %692 = vmatprep.subr.mxu0 0.0
    %693 = vmatpush1.msra.mxu0 %v652
    %694 = vmatprep.subr.mxu0 0.0
    %695 = vmatpush1.msra.mxu0 %v651
    %696 = vmatprep.subr.mxu0 0.0
    %697 = vmatpush1.msra.mxu0 %v650
    %698 = vmatprep.subr.mxu0 0.0
    %699 = vmatpush2.msra.mxu0 0.0
    %700 = vmatprep.subr.mxu0 0.0
    %701 = vmatpush2.msra.mxu0 0.0
    %702 = vmatprep.subr.mxu0 0.0
    %703 = vmatpush2.msra.mxu0 0.0
    %704 = vmatprep.subr.mxu0 0.0
    %705 = vmatpush2.msra.mxu0 0.0
    %706 = vmatprep.subr.mxu0 0.0
    %707 = vmatpush2.msra.mxu0 0.0
    %708 = vmatprep.subr.mxu0 0.0
    %709 = vmatpush2.msra.mxu0 0.0
    %710 = vmatprep.subr.mxu0 0.0
    %711 = vmatpush2.msra.mxu0 0.0
    %712 = vmatprep.subr.mxu0 0.0
    %713 = vmatpush2.msra.mxu0 0.0
    %714 = vmatprep.subr.mxu0 0.0
    %715 = vmatpush2.msra.mxu0 0.0
    %716 = vmatprep.subr.mxu0 0.0
    %717 = vmatpush2.msra.mxu0 0.0
    %718 = vmatprep.subr.mxu0 0.0
    %719 = vmatpush2.msra.mxu0 0.0
    %720 = vmatprep.subr.mxu0 0.0
    %721 = vmatpush2.msra.mxu0 0.0
    %722 = vmatprep.subr.mxu0 0.0
    %723 = vmatpush2.msra.mxu0 0.0
    %724 = vmatprep.subr.mxu0 0.0
    %725 = vmatpush2.msra.mxu0 0.0
    %726 = vmatprep.subr.mxu0 0.0
    %727 = vmatpush2.msra.mxu0 0.0
    %728 = vmatprep.subr.mxu0 0.0
    %729 = vmatpush2.msra.mxu0 0.0
    %730 = vmatprep.mubr.f32.mxu0 0.0
    %731 = vmatmul.mubr.f32.gmra.mxu0 %v649
    %v732 = vpop.f32.mrf.mxu0
    %v733 = vadd.f32 %v30, %v732
    %v734 = vpop.f32.mrf.mxu0
    %735 = vdwg.mxu0
    %v736 = vld [vmem:[#allocation2 + $0x50] sm:$0xff]
    %v737 = vld [vmem:[#allocation2 + $0xa8] sm:$0xff]
    %v738 = vld [vmem:[#allocation2 + $0x100] sm:$0xff]
    %v739 = vld [vmem:[#allocation2 + $0x158] sm:$0xff]
    %v740 = vld [vmem:[#allocation2 + $0x1b0] sm:$0xff]
    %v741 = vld [vmem:[#allocation2 + $0x208] sm:$0xff]
    %v742 = vld [vmem:[#allocation2 + $0x260] sm:$0xff]
    %v743 = vld [vmem:[#allocation2 + $0x2b8] sm:$0xff]
    %v744 = vld [vmem:[#allocation2 + $0x310] sm:$0xff]
    %v745 = vld [vmem:[#allocation2 + $0x368] sm:$0xff]
    %v746 = vld [vmem:[#allocation2 + $0x3c0] sm:$0xff]
    %v747 = vld [vmem:[#allocation2 + $0x418] sm:$0xff]
    %v748 = vld [vmem:[#allocation2 + $0x470] sm:$0xff]
    %v749 = vld [vmem:[#allocation2 + $0x4c8] sm:$0xff]
    %v750 = vld [vmem:[#allocation2 + $0x520] sm:$0xff]
    %v751 = vld [vmem:[#allocation2 + $0x578] sm:$0xff]
    %752 = vmatprep.subr.mxu0 0.0
    %753 = vmatpush1.msra.mxu0 %v751
    %754 = vmatprep.subr.mxu0 0.0
    %755 = vmatpush1.msra.mxu0 %v750
    %756 = vmatprep.subr.mxu0 0.0
    %757 = vmatpush1.msra.mxu0 %v749
    %758 = vmatprep.subr.mxu0 0.0
    %759 = vmatpush1.msra.mxu0 %v748
    %760 = vmatprep.subr.mxu0 0.0
    %761 = vmatpush1.msra.mxu0 %v747
    %762 = vmatprep.subr.mxu0 0.0
    %763 = vmatpush1.msra.mxu0 %v746
    %764 = vmatprep.subr.mxu0 0.0
    %765 = vmatpush1.msra.mxu0 %v745
    %766 = vmatprep.subr.mxu0 0.0
    %767 = vmatpush1.msra.mxu0 %v744
    %768 = vmatprep.subr.mxu0 0.0
    %769 = vmatpush1.msra.mxu0 %v743
    %770 = vmatprep.subr.mxu0 0.0
    %771 = vmatpush1.msra.mxu0 %v742
    %772 = vmatprep.subr.mxu0 0.0
    %773 = vmatpush1.msra.mxu0 %v741
    %774 = vmatprep.subr.mxu0 0.0
    %775 = vmatpush1.msra.mxu0 %v740
    %776 = vmatprep.subr.mxu0 0.0
    %777 = vmatpush1.msra.mxu0 %v739
    %778 = vmatprep.subr.mxu0 0.0
    %779 = vmatpush1.msra.mxu0 %v738
    %780 = vmatprep.subr.mxu0 0.0
    %781 = vmatpush1.msra.mxu0 %v737
    %782 = vmatprep.subr.mxu0 0.0
    %783 = vmatpush1.msra.mxu0 %v736
    %784 = vmatprep.subr.mxu0 0.0
    %785 = vmatpush2.msra.mxu0 0.0
    %786 = vmatprep.subr.mxu0 0.0
    %787 = vmatpush2.msra.mxu0 0.0
    %788 = vmatprep.subr.mxu0 0.0
    %789 = vmatpush2.msra.mxu0 0.0
    %790 = vmatprep.subr.mxu0 0.0
    %791 = vmatpush2.msra.mxu0 0.0
    %792 = vmatprep.subr.mxu0 0.0
    %793 = vmatpush2.msra.mxu0 0.0
    %794 = vmatprep.subr.mxu0 0.0
    %795 = vmatpush2.msra.mxu0 0.0
    %796 = vmatprep.subr.mxu0 0.0
    %797 = vmatpush2.msra.mxu0 0.0
    %798 = vmatprep.subr.mxu0 0.0
    %799 = vmatpush2.msra.mxu0 0.0
    %800 = vmatprep.subr.mxu0 0.0
    %801 = vmatpush2.msra.mxu0 0.0
    %802 = vmatprep.subr.mxu0 0.0
    %803 = vmatpush2.msra.mxu0 0.0
    %804 = vmatprep.subr.mxu0 0.0
    %805 = vmatpush2.msra.mxu0 0.0
    %806 = vmatprep.subr.mxu0 0.0
    %807 = vmatpush2.msra.mxu0 0.0
    %808 = vmatprep.subr.mxu0 0.0
    %809 = vmatpush2.msra.mxu0 0.0
    %810 = vmatprep.subr.mxu0 0.0
    %811 = vmatpush2.msra.mxu0 0.0
    %812 = vmatprep.subr.mxu0 0.0
    %813 = vmatpush2.msra.mxu0 0.0
    %814 = vmatprep.subr.mxu0 0.0
    %815 = vmatpush2.msra.mxu0 0.0
    %816 = vmatprep.mubr.f32.mxu0 0.0
    %817 = vmatmul.mubr.f32.gmra.mxu0 %v733
    %v818 = vpop.f32.mrf.mxu0
    %v819 = vadd.f32 0.0, %v818
    %v820 = vpop.f32.mrf.mxu0
    %821 = vdwg.mxu0
    %vm822 = vcmask 8192
    %823 = vst.msk [vmem:[#allocation5] sm:$0x1] %vm822, %v819
    // Predicated region
    $region14: #{genblast_forward.1} parent=1 // pred_check
      _
    $region15: #{genblast_forward.1} parent=1 // pred_check_branch
      %825 = sbr.rel (0) target = $region17
    $region16: #{genblast_forward.1} parent=1 // pred_region
      %s827 = ssub.s32 16, 16
      %828 = vsyncadd [#allocation4], %s827
      %s830 = sshll.u32 [#allocation5], 4
      %s831 = int_to_ptr.vmem [resolvable:$true] %s830
      %833 = dma.vmem_to_hbm [thread:$0]  %s831, 16, %s2, [#allocation4]
    $region17: #{genblast_forward.1} parent=1 // pred_fallthru
      _
    // Predicated region
    $region18: #{genblast_forward.1} parent=1 // pred_check
      _
    $region19: #{genblast_forward.1} parent=1 // pred_check_branch
      %835 = sbr.rel (0) target = $region21
    $region20: #{genblast_forward.1} parent=1 // pred_region
      %836 = dma.done [#allocation4], 16
    $region21: #{genblast_forward.1} parent=1 // pred_fallthru
      _
    %837 = vsyncpa [#allocation3], 1
    %838 = vsyncpa [#allocation4], 1

</llo_original>
